<compile_context>
chip_gen: v7x
topology: tpu7x:2x2x1
jax: 0.10.0
libtpu: 0.0.40
codegen_flags: <defaults>
</compile_context>

<pallas_src>
import jax
import jax.numpy as jnp
from jax.experimental import pallas as pl
from jax.experimental.pallas import tpu as pltpu


def lstm_encoder_kernel(x_ref, wl_ref, bl_ref, wih_ref, whh_ref, b_ref, hc_ref):
    """Single invocation: hoisted batched matmuls + fully unrolled time recurrence.

    x_ref   : (S*B, I)   time-major flattened input (row = t*B + b)
    wl_ref  : (I, E)     linear weight (transposed)
    bl_ref  : (1, E)     linear bias
    wih_ref : (E, 4H)    LSTM input-hidden weight (transposed)
    whh_ref : (H, 4H)    LSTM hidden-hidden weight (transposed)
    b_ref   : (1, 4H)    b_ih + b_hh
    hc_ref  : (B, 2H)    output slab: [h_T | c_T] concatenated along lanes
    """
    SB = x_ref.shape[0]
    G = whh_ref.shape[1]              # 4H
    H = G // 4
    B = hc_ref.shape[0]
    S = SB // B

    # --- Phase 1 (time-parallel, hoisted): one pass over all S*B rows ---------
    # embedded = relu(x @ W_lin + b_lin); dropout(p=0) is the identity.
    emb = jnp.maximum(
        jnp.dot(x_ref[...], wl_ref[...], preferred_element_type=jnp.float32)
        + bl_ref[...],
        0.0)                                                       # (S*B, E)
    # input->hidden gate pre-activations + both LSTM biases, already time-major.
    gx = (jnp.dot(emb, wih_ref[...], preferred_element_type=jnp.float32)
          + b_ref[...])                                            # (S*B, 4H)

    # --- Phase 2 (serial): only h @ W_hh remains on the recurrent path --------
    whh = whh_ref[...]                # hoisted load; resident for the whole loop

    # Hoisted per-lane constants for the single-tanh gate activation:
    #   sigmoid(x) = 0.5 * tanh(x/2) + 0.5   on i/f/o lanes
    #   tanh(x)                              on g lanes
    lane = jax.lax.broadcasted_iota(jnp.int32, (1, G), 1)
    is_g = (lane >= 2 * H) & (lane < 3 * H)
    pre_s = jnp.where(is_g, 1.0, 0.5).astype(jnp.float32)    # pre-scale of gates
    post_s = pre_s                                            # post-scale of tanh
    post_b = jnp.where(is_g, 0.0, 0.5).astype(jnp.float32)   # post-bias

    h = jnp.zeros((B, H), jnp.float32)
    c = jnp.zeros((B, H), jnp.float32)

    # S is small and static: full unroll via Python loop (static row slices of gx).
    for t in range(S):
        gates = gx[t * B:(t + 1) * B, :] + jnp.dot(
            h, whh, preferred_element_type=jnp.float32)            # (B, 4H)
        # Single full-vreg EUP pass, then static gate slices [i | f | g | o].
        acts = jnp.tanh(gates * pre_s) * post_s + post_b
        i_g = acts[:, 0 * H:1 * H]
        f_g = acts[:, 1 * H:2 * H]
        g_g = acts[:, 2 * H:3 * H]
        o_g = acts[:, 3 * H:4 * H]
        c = f_g * c + i_g * g_g
        h = o_g * jnp.tanh(c)

    # One lane-dense store; wrapper splits into (ht, ct).
    hc_ref[...] = jnp.concatenate([h, c], axis=1)


def lstm_encoder(x, params):
    """x: (batch, seq, input_size) float32. Returns (ht, ct), each (1, B, H)."""
    wl, bl, wih, whh, b = (params["w_lin"], params["b_lin"],
                           params["w_ih"], params["w_hh"], params["b_lstm"])
    B, S, I = x.shape
    E = wl.shape[1]
    H = whh.shape[0]

    # Time-major rows (t*B + b): the tiny transpose is done by XLA, off the kernel.
    x_tm = jnp.transpose(x, (1, 0, 2)).reshape(S * B, I)
    bl2 = bl.reshape(1, E)
    b2 = b.reshape(1, 4 * H)

    hc = pl.pallas_call(
        lstm_encoder_kernel,
        out_shape=jax.ShapeDtypeStruct((B, 2 * H), jnp.float32),
        grid_spec=pltpu.PrefetchScalarGridSpec(
            num_scalar_prefetch=0,
            grid=(1,),                                          # single invocation
            in_specs=[
                pl.BlockSpec((S * B, I), lambda i: (0, 0)),     # x, time-major
                pl.BlockSpec((I, E), lambda i: (0, 0)),         # W_lin^T
                pl.BlockSpec((1, E), lambda i: (0, 0)),         # b_lin
                pl.BlockSpec((E, 4 * H), lambda i: (0, 0)),     # W_ih^T
                pl.BlockSpec((H, 4 * H), lambda i: (0, 0)),     # W_hh^T
                pl.BlockSpec((1, 4 * H), lambda i: (0, 0)),     # b_ih + b_hh
            ],
            out_specs=pl.BlockSpec((B, 2 * H), lambda i: (0, 0)),
        ),
        compiler_params=pltpu.CompilerParams(
            dimension_semantics=("arbitrary",)),
    )(x_tm, wl, bl2, wih, whh, b2)

    ht = hc[:, :H][None]
    ct = hc[:, H:][None]
    return ht, ct


def init_params(key, input_size, hidden_size, embedding_size):
    """Deterministic synthetic parameters (shapes match nn.Linear / nn.LSTM)."""
    ks = jax.random.split(key, 6)
    scale = 0.1
    return {
        # nn.Linear(input_size, embedding_size): weight (E, I), bias (E,)
        # stored transposed as (I, E)
        "w_lin": scale * jax.random.normal(ks[0], (input_size, embedding_size), jnp.float32),
        "b_lin": scale * jax.random.normal(ks[1], (embedding_size,), jnp.float32),
        # nn.LSTM: weight_ih_l0 (4H, E), weight_hh_l0 (4H, H), biases (4H,)
        # stored transposed as (E, 4H) / (H, 4H); the two biases are pre-summed.
        "w_ih": scale * jax.random.normal(ks[2], (embedding_size, 4 * hidden_size), jnp.float32),
        "w_hh": scale * jax.random.normal(ks[3], (hidden_size, 4 * hidden_size), jnp.float32),
        "b_lstm": (scale * jax.random.normal(ks[4], (4 * hidden_size,), jnp.float32)
                   + scale * jax.random.normal(ks[5], (4 * hidden_size,), jnp.float32)),
    }


def lstm_encoder_reference(x, params):
    """Pure-JAX reference (lax.scan) mirroring the PyTorch forward."""
    wl, bl, wih, whh, b = (params["w_lin"], params["b_lin"],
                           params["w_ih"], params["w_hh"], params["b_lstm"])
    B = x.shape[0]
    H = whh.shape[0]
    emb = jnp.maximum(jnp.einsum("bsi,ie->bse", x, wl) + bl, 0.0)

    def step(carry, x_t):
        h, c = carry
        gates = x_t @ wih + h @ whh + b
        i = jax.nn.sigmoid(gates[:, 0 * H:1 * H])
        f = jax.nn.sigmoid(gates[:, 1 * H:2 * H])
        g = jnp.tanh(gates[:, 2 * H:3 * H])
        o = jax.nn.sigmoid(gates[:, 3 * H:4 * H])
        c = f * c + i * g
        h = o * jnp.tanh(c)
        return (h, c), None

    h0 = jnp.zeros((B, H), jnp.float32)
    c0 = jnp.zeros((B, H), jnp.float32)
    (h, c), _ = jax.lax.scan(step, (h0, c0), jnp.transpose(emb, (1, 0, 2)))
    return h[None], c[None]


if __name__ == "__main__":
    # Small shapes consistent with the module's forward.
    batch, seq, input_size, embedding_size, hidden_size = 2, 8, 16, 32, 32

    key = jax.random.PRNGKey(0)
    k_x, k_p = jax.random.split(key)
    x = jax.random.normal(k_x, (batch, seq, input_size), jnp.float32)
    params = init_params(k_p, input_size, hidden_size, embedding_size)

    ht, ct = jax.block_until_ready(lstm_encoder(x, params))

    ht_ref, ct_ref = lstm_encoder_reference(x, params)
    assert ht.shape == (1, batch, hidden_size) and ct.shape == (1, batch, hidden_size)
    assert jnp.allclose(ht, ht_ref, atol=1e-5, rtol=1e-5)
    assert jnp.allclose(ct, ct_ref, atol=1e-5, rtol=1e-5)

    # TODO(synk): num_layers > 1 and dropout > 0 (training-mode RNG mask) not modeled;
    # module defaults are num_layers=1, dropout=0, which this kernel matches.
    print("KERNEL_OK")
</pallas_src>

<mosaic_0001>
module attributes {stable_mosaic.version = 11 : i64} {
  func.func @lstm_encoder_kernel(%arg0: i32, %arg1: memref<16x16xf32, #tpu.memory_space<vmem>>, %arg2: memref<16x32xf32, #tpu.memory_space<vmem>>, %arg3: memref<1x32xf32, #tpu.memory_space<vmem>>, %arg4: memref<32x128xf32, #tpu.memory_space<vmem>>, %arg5: memref<32x128xf32, #tpu.memory_space<vmem>>, %arg6: memref<1x128xf32, #tpu.memory_space<vmem>>, %arg7: memref<2x64xf32, #tpu.memory_space<vmem>>) attributes {dimension_semantics = [#tpu.dimension_semantics<arbitrary>], iteration_bounds = array<i64: 1>, scalar_prefetch = 0 : i64, scratch_operands = 0 : i64, tpu.core_type = #tpu.core_type<tc>, window_params = [{pipeline_mode = #tpu.pipeline_mode<synchronous>, transform_indices = @transform_0, window_bounds = array<i64: 16, 16>}, {pipeline_mode = #tpu.pipeline_mode<synchronous>, transform_indices = @transform_1, window_bounds = array<i64: 16, 32>}, {pipeline_mode = #tpu.pipeline_mode<synchronous>, transform_indices = @transform_2, window_bounds = array<i64: 1, 32>}, {pipeline_mode = #tpu.pipeline_mode<synchronous>, transform_indices = @transform_3, window_bounds = array<i64: 32, 128>}, {pipeline_mode = #tpu.pipeline_mode<synchronous>, transform_indices = @transform_4, window_bounds = array<i64: 32, 128>}, {pipeline_mode = #tpu.pipeline_mode<synchronous>, transform_indices = @transform_5, window_bounds = array<i64: 1, 128>}, {pipeline_mode = #tpu.pipeline_mode<synchronous>, transform_indices = @transform_6, window_bounds = array<i64: 2, 64>}]} {
    %c0 = arith.constant 0 : index
    %c0_0 = arith.constant 0 : index
    %0 = vector.load %arg1[%c0, %c0_0] : memref<16x16xf32, #tpu.memory_space<vmem>>, vector<16x16xf32>
    %c0_1 = arith.constant 0 : index
    %c0_2 = arith.constant 0 : index
    %1 = vector.load %arg2[%c0_1, %c0_2] : memref<16x32xf32, #tpu.memory_space<vmem>>, vector<16x32xf32>
    %cst = arith.constant dense<0.000000e+00> : vector<16x32xf32>
    %2 = tpu.matmul %0, %1, %cst {dimension_numbers = #tpu.dot_dimension_numbers<[1], [0], [0], [1], [0, 0, 1, 1], [], []>} : vector<16x16xf32>, vector<16x32xf32>, vector<16x32xf32> -> vector<16x32xf32>
    %c0_3 = arith.constant 0 : index
    %c0_4 = arith.constant 0 : index
    %3 = vector.load %arg3[%c0_3, %c0_4] : memref<1x32xf32, #tpu.memory_space<vmem>>, vector<1x32xf32>
    %4 = vector.broadcast %3 : vector<1x32xf32> to vector<16x32xf32>
    %5 = arith.addf %2, %4 : vector<16x32xf32>
    %cst_5 = arith.constant 0.000000e+00 : f32
    %6 = vector.broadcast %cst_5 : f32 to vector<16x32xf32>
    %7 = arith.maximumf %5, %6 : vector<16x32xf32>
    %c0_6 = arith.constant 0 : index
    %c0_7 = arith.constant 0 : index
    %8 = vector.load %arg4[%c0_6, %c0_7] : memref<32x128xf32, #tpu.memory_space<vmem>>, vector<32x128xf32>
    %cst_8 = arith.constant dense<0.000000e+00> : vector<16x128xf32>
    %9 = tpu.matmul %7, %8, %cst_8 {dimension_numbers = #tpu.dot_dimension_numbers<[1], [0], [0], [1], [0, 0, 1, 1], [], []>} : vector<16x32xf32>, vector<32x128xf32>, vector<16x128xf32> -> vector<16x128xf32>
    %c0_9 = arith.constant 0 : index
    %c0_10 = arith.constant 0 : index
    %10 = vector.load %arg6[%c0_9, %c0_10] : memref<1x128xf32, #tpu.memory_space<vmem>>, vector<1x128xf32>
    %11 = vector.broadcast %10 : vector<1x128xf32> to vector<16x128xf32>
    %12 = arith.addf %9, %11 : vector<16x128xf32>
    %c0_11 = arith.constant 0 : index
    %c0_12 = arith.constant 0 : index
    %13 = vector.load %arg5[%c0_11, %c0_12] : memref<32x128xf32, #tpu.memory_space<vmem>>, vector<32x128xf32>
    %14 = tpu.iota {dimensions = array<i32: 1>} : vector<1x128xi32>
    %c64_i32 = arith.constant 64 : i32
    %15 = vector.broadcast %c64_i32 : i32 to vector<1x128xi32>
    %16 = arith.cmpi sge, %14, %15 : vector<1x128xi32>
    %c96_i32 = arith.constant 96 : i32
    %17 = vector.broadcast %c96_i32 : i32 to vector<1x128xi32>
    %18 = arith.cmpi slt, %14, %17 : vector<1x128xi32>
    %19 = arith.andi %16, %18 : vector<1x128xi1>
    %cst_13 = arith.constant 1.000000e+00 : f32
    %cst_14 = arith.constant 5.000000e-01 : f32
    %20 = vector.broadcast %cst_13 : f32 to vector<1x128xf32>
    %21 = vector.broadcast %cst_14 : f32 to vector<1x128xf32>
    %22 = arith.select %19, %20, %21 : vector<1x128xi1>, vector<1x128xf32>
    %cst_15 = arith.constant 0.000000e+00 : f32
    %cst_16 = arith.constant 5.000000e-01 : f32
    %23 = vector.broadcast %cst_15 : f32 to vector<1x128xf32>
    %24 = vector.broadcast %cst_16 : f32 to vector<1x128xf32>
    %25 = arith.select %19, %23, %24 : vector<1x128xi1>, vector<1x128xf32>
    %cst_17 = arith.constant 0.000000e+00 : f32
    %26 = vector.broadcast %cst_17 : f32 to vector<2x32xf32>
    %cst_18 = arith.constant 0.000000e+00 : f32
    %27 = vector.broadcast %cst_18 : f32 to vector<2x32xf32>
    %28 = vector.extract_strided_slice %12 {offsets = [0, 0], sizes = [2, 128], strides = [1, 1]} : vector<16x128xf32> to vector<2x128xf32>
    %cst_19 = arith.constant dense<0.000000e+00> : vector<2x128xf32>
    %29 = tpu.matmul %26, %13, %cst_19 {dimension_numbers = #tpu.dot_dimension_numbers<[1], [0], [0], [1], [0, 0, 1, 1], [], []>} : vector<2x32xf32>, vector<32x128xf32>, vector<2x128xf32> -> vector<2x128xf32>
    %30 = arith.addf %28, %29 : vector<2x128xf32>
    %31 = vector.broadcast %22 : vector<1x128xf32> to vector<2x128xf32>
    %32 = arith.mulf %30, %31 : vector<2x128xf32>
    %33 = math.tanh %32 : vector<2x128xf32>
    %34 = vector.broadcast %22 : vector<1x128xf32> to vector<2x128xf32>
    %35 = arith.mulf %33, %34 : vector<2x128xf32>
    %36 = vector.broadcast %25 : vector<1x128xf32> to vector<2x128xf32>
    %37 = arith.addf %35, %36 : vector<2x128xf32>
    %38 = vector.extract_strided_slice %37 {offsets = [0, 0], sizes = [2, 32], strides = [1, 1]} : vector<2x128xf32> to vector<2x32xf32>
    %39 = vector.extract_strided_slice %37 {offsets = [0, 32], sizes = [2, 32], strides = [1, 1]} : vector<2x128xf32> to vector<2x32xf32>
    %40 = vector.extract_strided_slice %37 {offsets = [0, 64], sizes = [2, 32], strides = [1, 1]} : vector<2x128xf32> to vector<2x32xf32>
    %41 = vector.extract_strided_slice %37 {offsets = [0, 96], sizes = [2, 32], strides = [1, 1]} : vector<2x128xf32> to vector<2x32xf32>
    %42 = arith.mulf %39, %27 : vector<2x32xf32>
    %43 = arith.mulf %38, %40 : vector<2x32xf32>
    %44 = arith.addf %42, %43 : vector<2x32xf32>
    %45 = math.tanh %44 : vector<2x32xf32>
    %46 = arith.mulf %41, %45 : vector<2x32xf32>
    %47 = vector.extract_strided_slice %12 {offsets = [2, 0], sizes = [2, 128], strides = [1, 1]} : vector<16x128xf32> to vector<2x128xf32>
    %cst_20 = arith.constant dense<0.000000e+00> : vector<2x128xf32>
    %48 = tpu.matmul %46, %13, %cst_20 {dimension_numbers = #tpu.dot_dimension_numbers<[1], [0], [0], [1], [0, 0, 1, 1], [], []>} : vector<2x32xf32>, vector<32x128xf32>, vector<2x128xf32> -> vector<2x128xf32>
    %49 = arith.addf %47, %48 : vector<2x128xf32>
    %50 = vector.broadcast %22 : vector<1x128xf32> to vector<2x128xf32>
    %51 = arith.mulf %49, %50 : vector<2x128xf32>
    %52 = math.tanh %51 : vector<2x128xf32>
    %53 = vector.broadcast %22 : vector<1x128xf32> to vector<2x128xf32>
    %54 = arith.mulf %52, %53 : vector<2x128xf32>
    %55 = vector.broadcast %25 : vector<1x128xf32> to vector<2x128xf32>
    %56 = arith.addf %54, %55 : vector<2x128xf32>
    %57 = vector.extract_strided_slice %56 {offsets = [0, 0], sizes = [2, 32], strides = [1, 1]} : vector<2x128xf32> to vector<2x32xf32>
    %58 = vector.extract_strided_slice %56 {offsets = [0, 32], sizes = [2, 32], strides = [1, 1]} : vector<2x128xf32> to vector<2x32xf32>
    %59 = vector.extract_strided_slice %56 {offsets = [0, 64], sizes = [2, 32], strides = [1, 1]} : vector<2x128xf32> to vector<2x32xf32>
    %60 = vector.extract_strided_slice %56 {offsets = [0, 96], sizes = [2, 32], strides = [1, 1]} : vector<2x128xf32> to vector<2x32xf32>
    %61 = arith.mulf %58, %44 : vector<2x32xf32>
    %62 = arith.mulf %57, %59 : vector<2x32xf32>
    %63 = arith.addf %61, %62 : vector<2x32xf32>
    %64 = math.tanh %63 : vector<2x32xf32>
    %65 = arith.mulf %60, %64 : vector<2x32xf32>
    %66 = vector.extract_strided_slice %12 {offsets = [4, 0], sizes = [2, 128], strides = [1, 1]} : vector<16x128xf32> to vector<2x128xf32>
    %cst_21 = arith.constant dense<0.000000e+00> : vector<2x128xf32>
    %67 = tpu.matmul %65, %13, %cst_21 {dimension_numbers = #tpu.dot_dimension_numbers<[1], [0], [0], [1], [0, 0, 1, 1], [], []>} : vector<2x32xf32>, vector<32x128xf32>, vector<2x128xf32> -> vector<2x128xf32>
    %68 = arith.addf %66, %67 : vector<2x128xf32>
    %69 = vector.broadcast %22 : vector<1x128xf32> to vector<2x128xf32>
    %70 = arith.mulf %68, %69 : vector<2x128xf32>
    %71 = math.tanh %70 : vector<2x128xf32>
    %72 = vector.broadcast %22 : vector<1x128xf32> to vector<2x128xf32>
    %73 = arith.mulf %71, %72 : vector<2x128xf32>
    %74 = vector.broadcast %25 : vector<1x128xf32> to vector<2x128xf32>
    %75 = arith.addf %73, %74 : vector<2x128xf32>
    %76 = vector.extract_strided_slice %75 {offsets = [0, 0], sizes = [2, 32], strides = [1, 1]} : vector<2x128xf32> to vector<2x32xf32>
    %77 = vector.extract_strided_slice %75 {offsets = [0, 32], sizes = [2, 32], strides = [1, 1]} : vector<2x128xf32> to vector<2x32xf32>
    %78 = vector.extract_strided_slice %75 {offsets = [0, 64], sizes = [2, 32], strides = [1, 1]} : vector<2x128xf32> to vector<2x32xf32>
    %79 = vector.extract_strided_slice %75 {offsets = [0, 96], sizes = [2, 32], strides = [1, 1]} : vector<2x128xf32> to vector<2x32xf32>
    %80 = arith.mulf %77, %63 : vector<2x32xf32>
    %81 = arith.mulf %76, %78 : vector<2x32xf32>
    %82 = arith.addf %80, %81 : vector<2x32xf32>
    %83 = math.tanh %82 : vector<2x32xf32>
    %84 = arith.mulf %79, %83 : vector<2x32xf32>
    %85 = vector.extract_strided_slice %12 {offsets = [6, 0], sizes = [2, 128], strides = [1, 1]} : vector<16x128xf32> to vector<2x128xf32>
    %cst_22 = arith.constant dense<0.000000e+00> : vector<2x128xf32>
    %86 = tpu.matmul %84, %13, %cst_22 {dimension_numbers = #tpu.dot_dimension_numbers<[1], [0], [0], [1], [0, 0, 1, 1], [], []>} : vector<2x32xf32>, vector<32x128xf32>, vector<2x128xf32> -> vector<2x128xf32>
    %87 = arith.addf %85, %86 : vector<2x128xf32>
    %88 = vector.broadcast %22 : vector<1x128xf32> to vector<2x128xf32>
    %89 = arith.mulf %87, %88 : vector<2x128xf32>
    %90 = math.tanh %89 : vector<2x128xf32>
    %91 = vector.broadcast %22 : vector<1x128xf32> to vector<2x128xf32>
    %92 = arith.mulf %90, %91 : vector<2x128xf32>
    %93 = vector.broadcast %25 : vector<1x128xf32> to vector<2x128xf32>
    %94 = arith.addf %92, %93 : vector<2x128xf32>
    %95 = vector.extract_strided_slice %94 {offsets = [0, 0], sizes = [2, 32], strides = [1, 1]} : vector<2x128xf32> to vector<2x32xf32>
    %96 = vector.extract_strided_slice %94 {offsets = [0, 32], sizes = [2, 32], strides = [1, 1]} : vector<2x128xf32> to vector<2x32xf32>
    %97 = vector.extract_strided_slice %94 {offsets = [0, 64], sizes = [2, 32], strides = [1, 1]} : vector<2x128xf32> to vector<2x32xf32>
    %98 = vector.extract_strided_slice %94 {offsets = [0, 96], sizes = [2, 32], strides = [1, 1]} : vector<2x128xf32> to vector<2x32xf32>
    %99 = arith.mulf %96, %82 : vector<2x32xf32>
    %100 = arith.mulf %95, %97 : vector<2x32xf32>
    %101 = arith.addf %99, %100 : vector<2x32xf32>
    %102 = math.tanh %101 : vector<2x32xf32>
    %103 = arith.mulf %98, %102 : vector<2x32xf32>
    %104 = vector.extract_strided_slice %12 {offsets = [8, 0], sizes = [2, 128], strides = [1, 1]} : vector<16x128xf32> to vector<2x128xf32>
    %cst_23 = arith.constant dense<0.000000e+00> : vector<2x128xf32>
    %105 = tpu.matmul %103, %13, %cst_23 {dimension_numbers = #tpu.dot_dimension_numbers<[1], [0], [0], [1], [0, 0, 1, 1], [], []>} : vector<2x32xf32>, vector<32x128xf32>, vector<2x128xf32> -> vector<2x128xf32>
    %106 = arith.addf %104, %105 : vector<2x128xf32>
    %107 = vector.broadcast %22 : vector<1x128xf32> to vector<2x128xf32>
    %108 = arith.mulf %106, %107 : vector<2x128xf32>
    %109 = math.tanh %108 : vector<2x128xf32>
    %110 = vector.broadcast %22 : vector<1x128xf32> to vector<2x128xf32>
    %111 = arith.mulf %109, %110 : vector<2x128xf32>
    %112 = vector.broadcast %25 : vector<1x128xf32> to vector<2x128xf32>
    %113 = arith.addf %111, %112 : vector<2x128xf32>
    %114 = vector.extract_strided_slice %113 {offsets = [0, 0], sizes = [2, 32], strides = [1, 1]} : vector<2x128xf32> to vector<2x32xf32>
    %115 = vector.extract_strided_slice %113 {offsets = [0, 32], sizes = [2, 32], strides = [1, 1]} : vector<2x128xf32> to vector<2x32xf32>
    %116 = vector.extract_strided_slice %113 {offsets = [0, 64], sizes = [2, 32], strides = [1, 1]} : vector<2x128xf32> to vector<2x32xf32>
    %117 = vector.extract_strided_slice %113 {offsets = [0, 96], sizes = [2, 32], strides = [1, 1]} : vector<2x128xf32> to vector<2x32xf32>
    %118 = arith.mulf %115, %101 : vector<2x32xf32>
    %119 = arith.mulf %114, %116 : vector<2x32xf32>
    %120 = arith.addf %118, %119 : vector<2x32xf32>
    %121 = math.tanh %120 : vector<2x32xf32>
    %122 = arith.mulf %117, %121 : vector<2x32xf32>
    %123 = vector.extract_strided_slice %12 {offsets = [10, 0], sizes = [2, 128], strides = [1, 1]} : vector<16x128xf32> to vector<2x128xf32>
    %cst_24 = arith.constant dense<0.000000e+00> : vector<2x128xf32>
    %124 = tpu.matmul %122, %13, %cst_24 {dimension_numbers = #tpu.dot_dimension_numbers<[1], [0], [0], [1], [0, 0, 1, 1], [], []>} : vector<2x32xf32>, vector<32x128xf32>, vector<2x128xf32> -> vector<2x128xf32>
    %125 = arith.addf %123, %124 : vector<2x128xf32>
    %126 = vector.broadcast %22 : vector<1x128xf32> to vector<2x128xf32>
    %127 = arith.mulf %125, %126 : vector<2x128xf32>
    %128 = math.tanh %127 : vector<2x128xf32>
    %129 = vector.broadcast %22 : vector<1x128xf32> to vector<2x128xf32>
    %130 = arith.mulf %128, %129 : vector<2x128xf32>
    %131 = vector.broadcast %25 : vector<1x128xf32> to vector<2x128xf32>
    %132 = arith.addf %130, %131 : vector<2x128xf32>
    %133 = vector.extract_strided_slice %132 {offsets = [0, 0], sizes = [2, 32], strides = [1, 1]} : vector<2x128xf32> to vector<2x32xf32>
    %134 = vector.extract_strided_slice %132 {offsets = [0, 32], sizes = [2, 32], strides = [1, 1]} : vector<2x128xf32> to vector<2x32xf32>
    %135 = vector.extract_strided_slice %132 {offsets = [0, 64], sizes = [2, 32], strides = [1, 1]} : vector<2x128xf32> to vector<2x32xf32>
    %136 = vector.extract_strided_slice %132 {offsets = [0, 96], sizes = [2, 32], strides = [1, 1]} : vector<2x128xf32> to vector<2x32xf32>
    %137 = arith.mulf %134, %120 : vector<2x32xf32>
    %138 = arith.mulf %133, %135 : vector<2x32xf32>
    %139 = arith.addf %137, %138 : vector<2x32xf32>
    %140 = math.tanh %139 : vector<2x32xf32>
    %141 = arith.mulf %136, %140 : vector<2x32xf32>
    %142 = vector.extract_strided_slice %12 {offsets = [12, 0], sizes = [2, 128], strides = [1, 1]} : vector<16x128xf32> to vector<2x128xf32>
    %cst_25 = arith.constant dense<0.000000e+00> : vector<2x128xf32>
    %143 = tpu.matmul %141, %13, %cst_25 {dimension_numbers = #tpu.dot_dimension_numbers<[1], [0], [0], [1], [0, 0, 1, 1], [], []>} : vector<2x32xf32>, vector<32x128xf32>, vector<2x128xf32> -> vector<2x128xf32>
    %144 = arith.addf %142, %143 : vector<2x128xf32>
    %145 = vector.broadcast %22 : vector<1x128xf32> to vector<2x128xf32>
    %146 = arith.mulf %144, %145 : vector<2x128xf32>
    %147 = math.tanh %146 : vector<2x128xf32>
    %148 = vector.broadcast %22 : vector<1x128xf32> to vector<2x128xf32>
    %149 = arith.mulf %147, %148 : vector<2x128xf32>
    %150 = vector.broadcast %25 : vector<1x128xf32> to vector<2x128xf32>
    %151 = arith.addf %149, %150 : vector<2x128xf32>
    %152 = vector.extract_strided_slice %151 {offsets = [0, 0], sizes = [2, 32], strides = [1, 1]} : vector<2x128xf32> to vector<2x32xf32>
    %153 = vector.extract_strided_slice %151 {offsets = [0, 32], sizes = [2, 32], strides = [1, 1]} : vector<2x128xf32> to vector<2x32xf32>
    %154 = vector.extract_strided_slice %151 {offsets = [0, 64], sizes = [2, 32], strides = [1, 1]} : vector<2x128xf32> to vector<2x32xf32>
    %155 = vector.extract_strided_slice %151 {offsets = [0, 96], sizes = [2, 32], strides = [1, 1]} : vector<2x128xf32> to vector<2x32xf32>
    %156 = arith.mulf %153, %139 : vector<2x32xf32>
    %157 = arith.mulf %152, %154 : vector<2x32xf32>
    %158 = arith.addf %156, %157 : vector<2x32xf32>
    %159 = math.tanh %158 : vector<2x32xf32>
    %160 = arith.mulf %155, %159 : vector<2x32xf32>
    %161 = vector.extract_strided_slice %12 {offsets = [14, 0], sizes = [2, 128], strides = [1, 1]} : vector<16x128xf32> to vector<2x128xf32>
    %cst_26 = arith.constant dense<0.000000e+00> : vector<2x128xf32>
    %162 = tpu.matmul %160, %13, %cst_26 {dimension_numbers = #tpu.dot_dimension_numbers<[1], [0], [0], [1], [0, 0, 1, 1], [], []>} : vector<2x32xf32>, vector<32x128xf32>, vector<2x128xf32> -> vector<2x128xf32>
    %163 = arith.addf %161, %162 : vector<2x128xf32>
    %164 = vector.broadcast %22 : vector<1x128xf32> to vector<2x128xf32>
    %165 = arith.mulf %163, %164 : vector<2x128xf32>
    %166 = math.tanh %165 : vector<2x128xf32>
    %167 = vector.broadcast %22 : vector<1x128xf32> to vector<2x128xf32>
    %168 = arith.mulf %166, %167 : vector<2x128xf32>
    %169 = vector.broadcast %25 : vector<1x128xf32> to vector<2x128xf32>
    %170 = arith.addf %168, %169 : vector<2x128xf32>
    %171 = vector.extract_strided_slice %170 {offsets = [0, 0], sizes = [2, 32], strides = [1, 1]} : vector<2x128xf32> to vector<2x32xf32>
    %172 = vector.extract_strided_slice %170 {offsets = [0, 32], sizes = [2, 32], strides = [1, 1]} : vector<2x128xf32> to vector<2x32xf32>
    %173 = vector.extract_strided_slice %170 {offsets = [0, 64], sizes = [2, 32], strides = [1, 1]} : vector<2x128xf32> to vector<2x32xf32>
    %174 = vector.extract_strided_slice %170 {offsets = [0, 96], sizes = [2, 32], strides = [1, 1]} : vector<2x128xf32> to vector<2x32xf32>
    %175 = arith.mulf %172, %158 : vector<2x32xf32>
    %176 = arith.mulf %171, %173 : vector<2x32xf32>
    %177 = arith.addf %175, %176 : vector<2x32xf32>
    %178 = math.tanh %177 : vector<2x32xf32>
    %179 = arith.mulf %174, %178 : vector<2x32xf32>
    %180 = tpu.concatenate %179, %177 in 1 : vector<2x32xf32>, vector<2x32xf32> -> vector<2x64xf32>
    %c0_27 = arith.constant 0 : index
    %c0_28 = arith.constant 0 : index
    %181 = vector.load %arg7[%c0_27, %c0_28] : memref<2x64xf32, #tpu.memory_space<vmem>>, vector<2x64xf32>
    tpu.vector_store %arg7[%c0_27, %c0_28], %180 {strides = array<i32>} : memref<2x64xf32, #tpu.memory_space<vmem>>, vector<2x64xf32>,
    return
  }
  func.func @transform_0(%arg0: i32) -> (i32, i32) {
    %c0_i32 = arith.constant 0 : i32
    %c0_i32_0 = arith.constant 0 : i32
    %c0_i32_1 = arith.constant 0 : i32
    return %c0_i32, %c0_i32_0 : i32, i32
  }
  func.func @transform_1(%arg0: i32) -> (i32, i32) {
    %c0_i32 = arith.constant 0 : i32
    %c0_i32_0 = arith.constant 0 : i32
    %c0_i32_1 = arith.constant 0 : i32
    return %c0_i32, %c0_i32_0 : i32, i32
  }
  func.func @transform_2(%arg0: i32) -> (i32, i32) {
    %c0_i32 = arith.constant 0 : i32
    %c0_i32_0 = arith.constant 0 : i32
    %c0_i32_1 = arith.constant 0 : i32
    return %c0_i32, %c0_i32_0 : i32, i32
  }
  func.func @transform_3(%arg0: i32) -> (i32, i32) {
    %c0_i32 = arith.constant 0 : i32
    %c0_i32_0 = arith.constant 0 : i32
    %c0_i32_1 = arith.constant 0 : i32
    return %c0_i32, %c0_i32_0 : i32, i32
  }
  func.func @transform_4(%arg0: i32) -> (i32, i32) {
    %c0_i32 = arith.constant 0 : i32
    %c0_i32_0 = arith.constant 0 : i32
    %c0_i32_1 = arith.constant 0 : i32
    return %c0_i32, %c0_i32_0 : i32, i32
  }
  func.func @transform_5(%arg0: i32) -> (i32, i32) {
    %c0_i32 = arith.constant 0 : i32
    %c0_i32_0 = arith.constant 0 : i32
    %c0_i32_1 = arith.constant 0 : i32
    return %c0_i32, %c0_i32_0 : i32, i32
  }
  func.func @transform_6(%arg0: i32) -> (i32, i32) {
    %c0_i32 = arith.constant 0 : i32
    %c0_i32_0 = arith.constant 0 : i32
    %c0_i32_1 = arith.constant 0 : i32
    return %c0_i32, %c0_i32_0 : i32, i32
  }
}

</mosaic_0001>

<llo_original>
// kernel: tpu_custom_call.1
$region0: #{tpu_custom_call.1}
  #allocation0 [shape = 'u32[]', space=smem, size = 0x4, offset = 0x4, fixed_abs, tag = 'smem constant byte address 0x4 - core index']
  #allocation1 [shape = 'u32[144,128]{1,0:T(1,128)}', space=vmem, size = 0x12000, scoped, tag = 'internal scratch']
  %s0 = inlined_call_operand.hbm [shape: f32[16,16], index: 0, kind: input, shape index: {}]
  %s1 = inlined_call_operand.hbm [shape: f32[16,32], index: 1, kind: input, shape index: {}]
  %s2 = inlined_call_operand.vmem [shape: f32[1,32], index: 2, kind: input, shape index: {}]
  %s3 = inlined_call_operand.hbm [shape: f32[32,128], index: 3, kind: input, shape index: {}]
  %s4 = inlined_call_operand.hbm [shape: f32[32,128], index: 4, kind: input, shape index: {}]
  %s5 = inlined_call_operand.vmem [shape: f32[1,128], index: 5, kind: input, shape index: {}]
  %s6 = inlined_call_operand.hbm [shape: f32[2,64], index: 6, kind: output, shape index: {}]
  %s7 = sld [smem:[#allocation0]]
  $region50: #{tpu_custom_call.1} parent=0
    _
  %s9 = ssub.s32 1, %s7
  %s10 = scalar_select 0, %s9, %s7
  $region1: #{tpu_custom_call.1} parent=0
    #allocation2 [shape = 'u8[8192]{0}', space=vmem, size = 0x2000, scoped, tag = 'input window, operand 0, single buffered']
    #allocation3 [shape = 's32[1]{0}', space=sflag, size = 0x4, scoped, tag = 'scoped memory for tpu_custom_call.1']
    #allocation4 [shape = 's32[1]{0}', space=sflag, size = 0x4, scoped, tag = 'scoped memory for tpu_custom_call.1']
    #allocation5 [shape = 'u8[8192]{0}', space=vmem, size = 0x2000, scoped, tag = 'input window, operand 1, single buffered']
    #allocation6 [shape = 's32[1]{0}', space=sflag, size = 0x4, scoped, tag = 'scoped memory for tpu_custom_call.1']
    #allocation7 [shape = 'u8[16384]{0}', space=vmem, size = 0x4000, scoped, tag = 'input window, operand 3, single buffered']
    #allocation8 [shape = 'u8[16384]{0}', space=vmem, size = 0x4000, scoped, tag = 'input window, operand 4, single buffered']
    #allocation9 [shape = 's32[1]{0}', space=sflag, size = 0x4, scoped, tag = 'scoped memory for tpu_custom_call.1']
    #allocation10 [shape = 'u8[1024]{0}', space=vmem, size = 0x400, scoped, tag = 'output window, operand 0, single buffered']
    %11 = vsyncpa [#allocation3], 0
    %12 = vsyncpa [#allocation6], 0
    %13 = vsyncpa [#allocation9], 0
    %14 = vsyncpa [#allocation4], 0
    // Predicated region
    $region2: #{tpu_custom_call.1} parent=1 // pred_check
      _
    $region3: #{tpu_custom_call.1} parent=1 // pred_check_branch
      %16 = sbr.rel (0) target = $region5
    $region4: #{tpu_custom_call.1} parent=1 // pred_region
      %s18 = ssub.s32 256, 256
      %19 = vsyncadd [#allocation3], %s18
      %s20 = sshll.u32 [#allocation2], 4
      %s21 = int_to_ptr.vmem [resolvable:$true] %s20
      %26 = dma.hbm_to_vmem [thread:$0]  %s0, 256, %s21, [#allocation3], 128, 128, 8
    $region5: #{tpu_custom_call.1} parent=1 // pred_fallthru
      _
    // Predicated region
    $region6: #{tpu_custom_call.1} parent=1 // pred_check
      _
    $region7: #{tpu_custom_call.1} parent=1 // pred_check_branch
      %28 = sbr.rel (0) target = $region9
    $region8: #{tpu_custom_call.1} parent=1 // pred_region
      %s30 = ssub.s32 256, 256
      %31 = vsyncadd [#allocation6], %s30
      %s32 = sshll.u32 [#allocation5], 4
      %s33 = int_to_ptr.vmem [resolvable:$true] %s32
      %38 = dma.hbm_to_vmem [thread:$0]  %s1, 256, %s33, [#allocation6], 128, 128, 8
    $region9: #{tpu_custom_call.1} parent=1 // pred_fallthru
      _
    // Predicated region
    $region10: #{tpu_custom_call.1} parent=1 // pred_check
      _
    $region11: #{tpu_custom_call.1} parent=1 // pred_check_branch
      %40 = sbr.rel (0) target = $region13
    $region12: #{tpu_custom_call.1} parent=1 // pred_region
      _
    $region13: #{tpu_custom_call.1} parent=1 // pred_fallthru
      _
    // Predicated region
    $region14: #{tpu_custom_call.1} parent=1 // pred_check
      _
    $region15: #{tpu_custom_call.1} parent=1 // pred_check_branch
      %42 = sbr.rel (0) target = $region17
    $region16: #{tpu_custom_call.1} parent=1 // pred_region
      %s44 = ssub.s32 512, 512
      %45 = vsyncadd [#allocation6], %s44
      %s46 = sshll.u32 [#allocation7], 4
      %s47 = int_to_ptr.vmem [resolvable:$true] %s46
      %52 = dma.hbm_to_vmem [thread:$0]  %s3, 512, %s47, [#allocation6], 128, 128, 8
    $region17: #{tpu_custom_call.1} parent=1 // pred_fallthru
      _
    // Predicated region
    $region18: #{tpu_custom_call.1} parent=1 // pred_check
      _
    $region19: #{tpu_custom_call.1} parent=1 // pred_check_branch
      %54 = sbr.rel (0) target = $region21
    $region20: #{tpu_custom_call.1} parent=1 // pred_region
      %s56 = ssub.s32 512, 512
      %57 = vsyncadd [#allocation9], %s56
      %s58 = sshll.u32 [#allocation8], 4
      %s59 = int_to_ptr.vmem [resolvable:$true] %s58
      %64 = dma.hbm_to_vmem [thread:$0]  %s4, 512, %s59, [#allocation9], 128, 128, 8
    $region21: #{tpu_custom_call.1} parent=1 // pred_fallthru
      _
    // Predicated region
    $region22: #{tpu_custom_call.1} parent=1 // pred_check
      _
    $region23: #{tpu_custom_call.1} parent=1 // pred_check_branch
      %66 = sbr.rel (0) target = $region25
    $region24: #{tpu_custom_call.1} parent=1 // pred_region
      _
    $region25: #{tpu_custom_call.1} parent=1 // pred_fallthru
      _
    // Predicated region
    $region26: #{tpu_custom_call.1} parent=1 // pred_check
      _
    $region27: #{tpu_custom_call.1} parent=1 // pred_check_branch
      %68 = sbr.rel (0) target = $region29
    $region28: #{tpu_custom_call.1} parent=1 // pred_region
      %69 = dma.done [#allocation3], 256
    $region29: #{tpu_custom_call.1} parent=1 // pred_fallthru
      _
    // Predicated region
    $region30: #{tpu_custom_call.1} parent=1 // pred_check
      _
    $region31: #{tpu_custom_call.1} parent=1 // pred_check_branch
      %71 = sbr.rel (0) target = $region33
    $region32: #{tpu_custom_call.1} parent=1 // pred_region
      %72 = dma.done [#allocation6], 256
    $region33: #{tpu_custom_call.1} parent=1 // pred_fallthru
      _
    // Predicated region
    $region34: #{tpu_custom_call.1} parent=1 // pred_check
      _
    $region35: #{tpu_custom_call.1} parent=1 // pred_check_branch
      %74 = sbr.rel (0) target = $region37
    $region36: #{tpu_custom_call.1} parent=1 // pred_region
      %75 = dma.done [#allocation6], 512
    $region37: #{tpu_custom_call.1} parent=1 // pred_fallthru
      _
    // Predicated region
    $region38: #{tpu_custom_call.1} parent=1 // pred_check
      _
    $region39: #{tpu_custom_call.1} parent=1 // pred_check_branch
      %77 = sbr.rel (0) target = $region41
    $region40: #{tpu_custom_call.1} parent=1 // pred_region
      %78 = dma.done [#allocation9], 512
    $region41: #{tpu_custom_call.1} parent=1 // pred_fallthru
      _
    %v79 = vld [vmem:[#allocation2] sm:$0xff]
    %v80 = vld [vmem:[#allocation2 + $0x8] sm:$0xff]
    %v81 = vld [vmem:[#allocation5] sm:$0xff]
    %v82 = vld [vmem:[#allocation5 + $0x8] sm:$0xff]
    %v83 = vld [vmem:[%s2] sm:$0x1]
    %v85 = vlaneseq
    %v86 = vshrl.u32 %v85, 7
    %v87 = vsub.s32 0, %v86
    %v88 = vrot.slane %v83, %v87
    %vm90 = vcmask 130048
    %v92 = vsel %vm90, %v79, 0
    %v95 = vsel %vm90, %v80, 0
    %97 = vmatprep.subr.mxu0 0.0
    %98 = vmatpush1.msra.mxu0 %v81
    %99 = vmatprep.subr.mxu0 0.0
    %100 = vmatpush1.msra.mxu0 %v82
    %101 = vmatprep.subr.mxu0 0.0
    %102 = vmatpush1.msra.mxu0 0.0
    %103 = vmatprep.subr.mxu0 0.0
    %104 = vmatpush1.msra.mxu0 0.0
    %105 = vmatprep.subr.mxu0 0.0
    %106 = vmatpush1.msra.mxu0 0.0
    %107 = vmatprep.subr.mxu0 0.0
    %108 = vmatpush1.msra.mxu0 0.0
    %109 = vmatprep.subr.mxu0 0.0
    %110 = vmatpush1.msra.mxu0 0.0
    %111 = vmatprep.subr.mxu0 0.0
    %112 = vmatpush1.msra.mxu0 0.0
    %113 = vmatprep.subr.mxu0 0.0
    %114 = vmatpush1.msra.mxu0 0.0
    %115 = vmatprep.subr.mxu0 0.0
    %116 = vmatpush1.msra.mxu0 0.0
    %117 = vmatprep.subr.mxu0 0.0
    %118 = vmatpush1.msra.mxu0 0.0
    %119 = vmatprep.subr.mxu0 0.0
    %120 = vmatpush1.msra.mxu0 0.0
    %121 = vmatprep.subr.mxu0 0.0
    %122 = vmatpush1.msra.mxu0 0.0
    %123 = vmatprep.subr.mxu0 0.0
    %124 = vmatpush1.msra.mxu0 0.0
    %125 = vmatprep.subr.mxu0 0.0
    %126 = vmatpush1.msra.mxu0 0.0
    %127 = vmatprep.subr.mxu0 0.0
    %128 = vmatpush1.msra.mxu0 0.0
    %129 = vmatprep.subr.mxu0 0.0
    %130 = vmatpush1.msra.mxu0 0.0
    %131 = vmatprep.subr.mxu0 0.0
    %132 = vmatpush1.msra.mxu0 0.0
    %133 = vmatprep.subr.mxu0 0.0
    %134 = vmatpush1.msra.mxu0 0.0
    %135 = vmatprep.subr.mxu0 0.0
    %136 = vmatpush1.msra.mxu0 0.0
    %137 = vmatprep.subr.mxu0 0.0
    %138 = vmatpush1.msra.mxu0 0.0
    %139 = vmatprep.subr.mxu0 0.0
    %140 = vmatpush1.msra.mxu0 0.0
    %141 = vmatprep.subr.mxu0 0.0
    %142 = vmatpush1.msra.mxu0 0.0
    %143 = vmatprep.subr.mxu0 0.0
    %144 = vmatpush1.msra.mxu0 0.0
    %145 = vmatprep.subr.mxu0 0.0
    %146 = vmatpush1.msra.mxu0 0.0
    %147 = vmatprep.subr.mxu0 0.0
    %148 = vmatpush1.msra.mxu0 0.0
    %149 = vmatprep.subr.mxu0 0.0
    %150 = vmatpush1.msra.mxu0 0.0
    %151 = vmatprep.subr.mxu0 0.0
    %152 = vmatpush1.msra.mxu0 0.0
    %153 = vmatprep.subr.mxu0 0.0
    %154 = vmatpush1.msra.mxu0 0.0
    %155 = vmatprep.subr.mxu0 0.0
    %156 = vmatpush1.msra.mxu0 0.0
    %157 = vmatprep.subr.mxu0 0.0
    %158 = vmatpush1.msra.mxu0 0.0
    %159 = vmatprep.subr.mxu0 0.0
    %160 = vmatpush1.msra.mxu0 0.0
    %161 = vmatprep.mubr.f32.mxu0 0.0
    %162 = vmatmul.mubr.f32.gmra.mrb[0].mxu0 %v92
    %v163 = vpop.f32.mrb[0].mxu0
    %v164 = vadd.f32 %v88, %v163
    %v165 = vpop.f32.mrb[0].mxu0
    %166 = vmatprep.mubr.f32.mxu0 0.0
    %167 = vmatmul.mubr.f32.gmra.mrb[0].mxu0 %v95
    %v168 = vpop.f32.mrb[0].mxu0
    %v169 = vadd.f32 %v88, %v168
    %v170 = vpop.f32.mrb[0].mxu0
    %171 = vdwg.mxu0
    %v172 = vmax.f32 %v164, 0.0
    %v173 = vmax.f32 %v169, 0.0
    %v174 = vld [vmem:[#allocation7] sm:$0xff]
    %v175 = vld [vmem:[#allocation7 + $0x8] sm:$0xff]
    %v176 = vld [vmem:[#allocation7 + $0x10] sm:$0xff]
    %v177 = vld [vmem:[#allocation7 + $0x18] sm:$0xff]
    %v178 = vld [vmem:[%s5] sm:$0x1]
    %v180 = vlaneseq
    %v181 = vshrl.u32 %v180, 7
    %v182 = vsub.s32 0, %v181
    %v183 = vrot.slane %v178, %v182
    %vm185 = vcmask 261120
    %v187 = vsel %vm185, %v172, 0
    %v190 = vsel %vm185, %v173, 0
    %192 = vmatprep.subr.mxu0 0.0
    %193 = vmatpush1.msra.mxu0 %v174
    %194 = vmatprep.subr.mxu0 0.0
    %195 = vmatpush1.msra.mxu0 %v175
    %196 = vmatprep.subr.mxu0 0.0
    %197 = vmatpush1.msra.mxu0 %v176
    %198 = vmatprep.subr.mxu0 0.0
    %199 = vmatpush1.msra.mxu0 %v177
    %200 = vmatprep.subr.mxu0 0.0
    %201 = vmatpush1.msra.mxu0 0.0
    %202 = vmatprep.subr.mxu0 0.0
    %203 = vmatpush1.msra.mxu0 0.0
    %204 = vmatprep.subr.mxu0 0.0
    %205 = vmatpush1.msra.mxu0 0.0
    %206 = vmatprep.subr.mxu0 0.0
    %207 = vmatpush1.msra.mxu0 0.0
    %208 = vmatprep.subr.mxu0 0.0
    %209 = vmatpush1.msra.mxu0 0.0
    %210 = vmatprep.subr.mxu0 0.0
    %211 = vmatpush1.msra.mxu0 0.0
    %212 = vmatprep.subr.mxu0 0.0
    %213 = vmatpush1.msra.mxu0 0.0
    %214 = vmatprep.subr.mxu0 0.0
    %215 = vmatpush1.msra.mxu0 0.0
    %216 = vmatprep.subr.mxu0 0.0
    %217 = vmatpush1.msra.mxu0 0.0
    %218 = vmatprep.subr.mxu0 0.0
    %219 = vmatpush1.msra.mxu0 0.0
    %220 = vmatprep.subr.mxu0 0.0
    %221 = vmatpush1.msra.mxu0 0.0
    %222 = vmatprep.subr.mxu0 0.0
    %223 = vmatpush1.msra.mxu0 0.0
    %224 = vmatprep.subr.mxu0 0.0
    %225 = vmatpush1.msra.mxu0 0.0
    %226 = vmatprep.subr.mxu0 0.0
    %227 = vmatpush1.msra.mxu0 0.0
    %228 = vmatprep.subr.mxu0 0.0
    %229 = vmatpush1.msra.mxu0 0.0
    %230 = vmatprep.subr.mxu0 0.0
    %231 = vmatpush1.msra.mxu0 0.0
    %232 = vmatprep.subr.mxu0 0.0
    %233 = vmatpush1.msra.mxu0 0.0
    %234 = vmatprep.subr.mxu0 0.0
    %235 = vmatpush1.msra.mxu0 0.0
    %236 = vmatprep.subr.mxu0 0.0
    %237 = vmatpush1.msra.mxu0 0.0
    %238 = vmatprep.subr.mxu0 0.0
    %239 = vmatpush1.msra.mxu0 0.0
    %240 = vmatprep.subr.mxu0 0.0
    %241 = vmatpush1.msra.mxu0 0.0
    %242 = vmatprep.subr.mxu0 0.0
    %243 = vmatpush1.msra.mxu0 0.0
    %244 = vmatprep.subr.mxu0 0.0
    %245 = vmatpush1.msra.mxu0 0.0
    %246 = vmatprep.subr.mxu0 0.0
    %247 = vmatpush1.msra.mxu0 0.0
    %248 = vmatprep.subr.mxu0 0.0
    %249 = vmatpush1.msra.mxu0 0.0
    %250 = vmatprep.subr.mxu0 0.0
    %251 = vmatpush1.msra.mxu0 0.0
    %252 = vmatprep.subr.mxu0 0.0
    %253 = vmatpush1.msra.mxu0 0.0
    %254 = vmatprep.subr.mxu0 0.0
    %255 = vmatpush1.msra.mxu0 0.0
    %256 = vmatprep.mubr.f32.mxu0 0.0
    %257 = vmatmul.mubr.f32.gmra.mrb[0].mxu0 %v187
    %v258 = vpop.f32.mrb[0].mxu0
    %v259 = vadd.f32 %v183, %v258
    %v260 = vpop.f32.mrb[0].mxu0
    %261 = vmatprep.mubr.f32.mxu0 0.0
    %262 = vmatmul.mubr.f32.gmra.mrb[0].mxu0 %v190
    %v263 = vpop.f32.mrb[0].mxu0
    %v264 = vadd.f32 %v183, %v263
    %v265 = vpop.f32.mrb[0].mxu0
    %266 = vdwg.mxu0
    %v267 = vld [vmem:[#allocation8] sm:$0xff]
    %v268 = vld [vmem:[#allocation8 + $0x8] sm:$0xff]
    %v269 = vld [vmem:[#allocation8 + $0x10] sm:$0xff]
    %v270 = vld [vmem:[#allocation8 + $0x18] sm:$0xff]
    %v271 = vlaneseq
    %v272 = vand.u32 %v271, 127
    %vm273 = vcmp.ge.s32.totalorder %v272, 64
    %vm274 = vcmp.lt.s32.totalorder %v272, 96
    %vm275 = vmand %vm273, %vm274
    %v276 = vsel %vm275, 1.0, 0.5
    %v277 = vsel %vm275, 0.0, 0.5
    %v279 = vsel %vm185, 0.0, 0
    %281 = vmatprep.subr.mxu0 0.0
    %282 = vmatpush1.msra.mxu0 %v267
    %283 = vmatprep.subr.mxu0 0.0
    %284 = vmatpush1.msra.mxu0 %v268
    %285 = vmatprep.subr.mxu0 0.0
    %286 = vmatpush1.msra.mxu0 %v269
    %287 = vmatprep.subr.mxu0 0.0
    %288 = vmatpush1.msra.mxu0 %v270
    %289 = vmatprep.subr.mxu0 0.0
    %290 = vmatpush1.msra.mxu0 0.0
    %291 = vmatprep.subr.mxu0 0.0
    %292 = vmatpush1.msra.mxu0 0.0
    %293 = vmatprep.subr.mxu0 0.0
    %294 = vmatpush1.msra.mxu0 0.0
    %295 = vmatprep.subr.mxu0 0.0
    %296 = vmatpush1.msra.mxu0 0.0
    %297 = vmatprep.subr.mxu0 0.0
    %298 = vmatpush1.msra.mxu0 0.0
    %299 = vmatprep.subr.mxu0 0.0
    %300 = vmatpush1.msra.mxu0 0.0
    %301 = vmatprep.subr.mxu0 0.0
    %302 = vmatpush1.msra.mxu0 0.0
    %303 = vmatprep.subr.mxu0 0.0
    %304 = vmatpush1.msra.mxu0 0.0
    %305 = vmatprep.subr.mxu0 0.0
    %306 = vmatpush1.msra.mxu0 0.0
    %307 = vmatprep.subr.mxu0 0.0
    %308 = vmatpush1.msra.mxu0 0.0
    %309 = vmatprep.subr.mxu0 0.0
    %310 = vmatpush1.msra.mxu0 0.0
    %311 = vmatprep.subr.mxu0 0.0
    %312 = vmatpush1.msra.mxu0 0.0
    %313 = vmatprep.subr.mxu0 0.0
    %314 = vmatpush1.msra.mxu0 0.0
    %315 = vmatprep.subr.mxu0 0.0
    %316 = vmatpush1.msra.mxu0 0.0
    %317 = vmatprep.subr.mxu0 0.0
    %318 = vmatpush1.msra.mxu0 0.0
    %319 = vmatprep.subr.mxu0 0.0
    %320 = vmatpush1.msra.mxu0 0.0
    %321 = vmatprep.subr.mxu0 0.0
    %322 = vmatpush1.msra.mxu0 0.0
    %323 = vmatprep.subr.mxu0 0.0
    %324 = vmatpush1.msra.mxu0 0.0
    %325 = vmatprep.subr.mxu0 0.0
    %326 = vmatpush1.msra.mxu0 0.0
    %327 = vmatprep.subr.mxu0 0.0
    %328 = vmatpush1.msra.mxu0 0.0
    %329 = vmatprep.subr.mxu0 0.0
    %330 = vmatpush1.msra.mxu0 0.0
    %331 = vmatprep.subr.mxu0 0.0
    %332 = vmatpush1.msra.mxu0 0.0
    %333 = vmatprep.subr.mxu0 0.0
    %334 = vmatpush1.msra.mxu0 0.0
    %335 = vmatprep.subr.mxu0 0.0
    %336 = vmatpush1.msra.mxu0 0.0
    %337 = vmatprep.subr.mxu0 0.0
    %338 = vmatpush1.msra.mxu0 0.0
    %339 = vmatprep.subr.mxu0 0.0
    %340 = vmatpush1.msra.mxu0 0.0
    %341 = vmatprep.subr.mxu0 0.0
    %342 = vmatpush1.msra.mxu0 0.0
    %343 = vmatprep.subr.mxu0 0.0
    %344 = vmatpush1.msra.mxu0 0.0
    %345 = vmatprep.mubr.f32.mxu0 0.0
    %346 = vmatmul.mubr.f32.gmra.mrb[0].mxu0 %v279
    %v347 = vpop.f32.mrb[0].mxu0
    %v348 = vadd.f32 0.0, %v347
    %v349 = vpop.f32.mrb[0].mxu0
    %350 = vdwg.mxu0
    %v351 = vadd.f32 %v259, %v348
    %v352 = vmul.f32 %v351, %v276
    %v353 = vtanh.pop %v352
    %v354 = vmul.f32 %v353, %v276
    %v355 = vadd.f32 %v354, %v277
    %v356 = vmul.f32 %v355, 0.0
    %358 = vrot.lane.b32.xlu0 %v355, 64
    %v359 = vpop.permute.xlu0 %358
    %v361 = vmul.f32 %v355, %v359
    %363 = vrot.lane.b32.xlu0 %v361, 32
    %v364 = vpop.permute.xlu0 %363
    %v366 = vadd.f32 %v356, %v364
    %v367 = vtanh.pop %v366
    %369 = vrot.lane.b32.xlu0 %v367, 64
    %v370 = vpop.permute.xlu0 %369
    %v372 = vmul.f32 %v355, %v370
    %374 = vrot.lane.b32.xlu0 %v372, 32
    %v375 = vpop.permute.xlu0 %374
    %v376 = vsel %vm185, %v375, 0
    %378 = vmatprep.subr.mxu0 0.0
    %379 = vmatpush1.msra.mxu0 %v267
    %380 = vmatprep.subr.mxu0 0.0
    %381 = vmatpush1.msra.mxu0 %v268
    %382 = vmatprep.subr.mxu0 0.0
    %383 = vmatpush1.msra.mxu0 %v269
    %384 = vmatprep.subr.mxu0 0.0
    %385 = vmatpush1.msra.mxu0 %v270
    %386 = vmatprep.subr.mxu0 0.0
    %387 = vmatpush1.msra.mxu0 0.0
    %388 = vmatprep.subr.mxu0 0.0
    %389 = vmatpush1.msra.mxu0 0.0
    %390 = vmatprep.subr.mxu0 0.0
    %391 = vmatpush1.msra.mxu0 0.0
    %392 = vmatprep.subr.mxu0 0.0
    %393 = vmatpush1.msra.mxu0 0.0
    %394 = vmatprep.subr.mxu0 0.0
    %395 = vmatpush1.msra.mxu0 0.0
    %396 = vmatprep.subr.mxu0 0.0
    %397 = vmatpush1.msra.mxu0 0.0
    %398 = vmatprep.subr.mxu0 0.0
    %399 = vmatpush1.msra.mxu0 0.0
    %400 = vmatprep.subr.mxu0 0.0
    %401 = vmatpush1.msra.mxu0 0.0
    %402 = vmatprep.subr.mxu0 0.0
    %403 = vmatpush1.msra.mxu0 0.0
    %404 = vmatprep.subr.mxu0 0.0
    %405 = vmatpush1.msra.mxu0 0.0
    %406 = vmatprep.subr.mxu0 0.0
    %407 = vmatpush1.msra.mxu0 0.0
    %408 = vmatprep.subr.mxu0 0.0
    %409 = vmatpush1.msra.mxu0 0.0
    %410 = vmatprep.subr.mxu0 0.0
    %411 = vmatpush1.msra.mxu0 0.0
    %412 = vmatprep.subr.mxu0 0.0
    %413 = vmatpush1.msra.mxu0 0.0
    %414 = vmatprep.subr.mxu0 0.0
    %415 = vmatpush1.msra.mxu0 0.0
    %416 = vmatprep.subr.mxu0 0.0
    %417 = vmatpush1.msra.mxu0 0.0
    %418 = vmatprep.subr.mxu0 0.0
    %419 = vmatpush1.msra.mxu0 0.0
    %420 = vmatprep.subr.mxu0 0.0
    %421 = vmatpush1.msra.mxu0 0.0
    %422 = vmatprep.subr.mxu0 0.0
    %423 = vmatpush1.msra.mxu0 0.0
    %424 = vmatprep.subr.mxu0 0.0
    %425 = vmatpush1.msra.mxu0 0.0
    %426 = vmatprep.subr.mxu0 0.0
    %427 = vmatpush1.msra.mxu0 0.0
    %428 = vmatprep.subr.mxu0 0.0
    %429 = vmatpush1.msra.mxu0 0.0
    %430 = vmatprep.subr.mxu0 0.0
    %431 = vmatpush1.msra.mxu0 0.0
    %432 = vmatprep.subr.mxu0 0.0
    %433 = vmatpush1.msra.mxu0 0.0
    %434 = vmatprep.subr.mxu0 0.0
    %435 = vmatpush1.msra.mxu0 0.0
    %436 = vmatprep.subr.mxu0 0.0
    %437 = vmatpush1.msra.mxu0 0.0
    %438 = vmatprep.subr.mxu0 0.0
    %439 = vmatpush1.msra.mxu0 0.0
    %440 = vmatprep.subr.mxu0 0.0
    %441 = vmatpush1.msra.mxu0 0.0
    %442 = vmatprep.mubr.f32.mxu0 0.0
    %443 = vmatmul.mubr.f32.gmra.mrb[0].mxu0 %v376
    %v444 = vpop.f32.mrb[0].mxu0
    %v445 = vadd.f32 0.0, %v444
    %v446 = vpop.f32.mrb[0].mxu0
    %447 = vdwg.mxu0
    %v449 = vrot.slane %v445, 6
    %v451 = vadd.f32 %v259, %v449
    %v452 = vmul.f32 %v451, %v276
    %v453 = vtanh.pop %v452
    %v454 = vmul.f32 %v453, %v276
    %v455 = vadd.f32 %v454, %v277
    %v457 = vrot.slane %v366, 6
    %v459 = vmul.f32 %v455, %v457
    %461 = vrot.lane.b32.xlu0 %v455, 64
    %v462 = vpop.permute.xlu0 %461
    %v464 = vmul.f32 %v455, %v462
    %466 = vrot.lane.b32.xlu0 %v464, 32
    %v467 = vpop.permute.xlu0 %466
    %v469 = vadd.f32 %v459, %v467
    %v470 = vtanh.pop %v469
    %472 = vrot.lane.b32.xlu0 %v470, 64
    %v473 = vpop.permute.xlu0 %472
    %v475 = vmul.f32 %v455, %v473
    %v477 = vrot.slane %v475, 2
    %478 = vrot.lane.b32.xlu0 %v477, 32
    %v479 = vpop.permute.xlu0 %478
    %v480 = vsel %vm185, %v479, 0
    %482 = vmatprep.subr.mxu0 0.0
    %483 = vmatpush1.msra.mxu0 %v267
    %484 = vmatprep.subr.mxu0 0.0
    %485 = vmatpush1.msra.mxu0 %v268
    %486 = vmatprep.subr.mxu0 0.0
    %487 = vmatpush1.msra.mxu0 %v269
    %488 = vmatprep.subr.mxu0 0.0
    %489 = vmatpush1.msra.mxu0 %v270
    %490 = vmatprep.subr.mxu0 0.0
    %491 = vmatpush1.msra.mxu0 0.0
    %492 = vmatprep.subr.mxu0 0.0
    %493 = vmatpush1.msra.mxu0 0.0
    %494 = vmatprep.subr.mxu0 0.0
    %495 = vmatpush1.msra.mxu0 0.0
    %496 = vmatprep.subr.mxu0 0.0
    %497 = vmatpush1.msra.mxu0 0.0
    %498 = vmatprep.subr.mxu0 0.0
    %499 = vmatpush1.msra.mxu0 0.0
    %500 = vmatprep.subr.mxu0 0.0
    %501 = vmatpush1.msra.mxu0 0.0
    %502 = vmatprep.subr.mxu0 0.0
    %503 = vmatpush1.msra.mxu0 0.0
    %504 = vmatprep.subr.mxu0 0.0
    %505 = vmatpush1.msra.mxu0 0.0
    %506 = vmatprep.subr.mxu0 0.0
    %507 = vmatpush1.msra.mxu0 0.0
    %508 = vmatprep.subr.mxu0 0.0
    %509 = vmatpush1.msra.mxu0 0.0
    %510 = vmatprep.subr.mxu0 0.0
    %511 = vmatpush1.msra.mxu0 0.0
    %512 = vmatprep.subr.mxu0 0.0
    %513 = vmatpush1.msra.mxu0 0.0
    %514 = vmatprep.subr.mxu0 0.0
    %515 = vmatpush1.msra.mxu0 0.0
    %516 = vmatprep.subr.mxu0 0.0
    %517 = vmatpush1.msra.mxu0 0.0
    %518 = vmatprep.subr.mxu0 0.0
    %519 = vmatpush1.msra.mxu0 0.0
    %520 = vmatprep.subr.mxu0 0.0
    %521 = vmatpush1.msra.mxu0 0.0
    %522 = vmatprep.subr.mxu0 0.0
    %523 = vmatpush1.msra.mxu0 0.0
    %524 = vmatprep.subr.mxu0 0.0
    %525 = vmatpush1.msra.mxu0 0.0
    %526 = vmatprep.subr.mxu0 0.0
    %527 = vmatpush1.msra.mxu0 0.0
    %528 = vmatprep.subr.mxu0 0.0
    %529 = vmatpush1.msra.mxu0 0.0
    %530 = vmatprep.subr.mxu0 0.0
    %531 = vmatpush1.msra.mxu0 0.0
    %532 = vmatprep.subr.mxu0 0.0
    %533 = vmatpush1.msra.mxu0 0.0
    %534 = vmatprep.subr.mxu0 0.0
    %535 = vmatpush1.msra.mxu0 0.0
    %536 = vmatprep.subr.mxu0 0.0
    %537 = vmatpush1.msra.mxu0 0.0
    %538 = vmatprep.subr.mxu0 0.0
    %539 = vmatpush1.msra.mxu0 0.0
    %540 = vmatprep.subr.mxu0 0.0
    %541 = vmatpush1.msra.mxu0 0.0
    %542 = vmatprep.subr.mxu0 0.0
    %543 = vmatpush1.msra.mxu0 0.0
    %544 = vmatprep.subr.mxu0 0.0
    %545 = vmatpush1.msra.mxu0 0.0
    %546 = vmatprep.mubr.f32.mxu0 0.0
    %547 = vmatmul.mubr.f32.gmra.mrb[0].mxu0 %v480
    %v548 = vpop.f32.mrb[0].mxu0
    %v549 = vadd.f32 0.0, %v548
    %v550 = vpop.f32.mrb[0].mxu0
    %551 = vdwg.mxu0
    %v553 = vrot.slane %v549, 4
    %v555 = vadd.f32 %v259, %v553
    %v556 = vmul.f32 %v555, %v276
    %v557 = vtanh.pop %v556
    %v558 = vmul.f32 %v557, %v276
    %v559 = vadd.f32 %v558, %v277
    %v561 = vrot.slane %v469, 6
    %v563 = vmul.f32 %v559, %v561
    %565 = vrot.lane.b32.xlu0 %v559, 64
    %v566 = vpop.permute.xlu0 %565
    %v568 = vmul.f32 %v559, %v566
    %570 = vrot.lane.b32.xlu0 %v568, 32
    %v571 = vpop.permute.xlu0 %570
    %v573 = vadd.f32 %v563, %v571
    %v574 = vtanh.pop %v573
    %576 = vrot.lane.b32.xlu0 %v574, 64
    %v577 = vpop.permute.xlu0 %576
    %v579 = vmul.f32 %v559, %v577
    %v581 = vrot.slane %v579, 4
    %582 = vrot.lane.b32.xlu0 %v581, 32
    %v583 = vpop.permute.xlu0 %582
    %v584 = vsel %vm185, %v583, 0
    %586 = vmatprep.subr.mxu0 0.0
    %587 = vmatpush1.msra.mxu0 %v267
    %588 = vmatprep.subr.mxu0 0.0
    %589 = vmatpush1.msra.mxu0 %v268
    %590 = vmatprep.subr.mxu0 0.0
    %591 = vmatpush1.msra.mxu0 %v269
    %592 = vmatprep.subr.mxu0 0.0
    %593 = vmatpush1.msra.mxu0 %v270
    %594 = vmatprep.subr.mxu0 0.0
    %595 = vmatpush1.msra.mxu0 0.0
    %596 = vmatprep.subr.mxu0 0.0
    %597 = vmatpush1.msra.mxu0 0.0
    %598 = vmatprep.subr.mxu0 0.0
    %599 = vmatpush1.msra.mxu0 0.0
    %600 = vmatprep.subr.mxu0 0.0
    %601 = vmatpush1.msra.mxu0 0.0
    %602 = vmatprep.subr.mxu0 0.0
    %603 = vmatpush1.msra.mxu0 0.0
    %604 = vmatprep.subr.mxu0 0.0
    %605 = vmatpush1.msra.mxu0 0.0
    %606 = vmatprep.subr.mxu0 0.0
    %607 = vmatpush1.msra.mxu0 0.0
    %608 = vmatprep.subr.mxu0 0.0
    %609 = vmatpush1.msra.mxu0 0.0
    %610 = vmatprep.subr.mxu0 0.0
    %611 = vmatpush1.msra.mxu0 0.0
    %612 = vmatprep.subr.mxu0 0.0
    %613 = vmatpush1.msra.mxu0 0.0
    %614 = vmatprep.subr.mxu0 0.0
    %615 = vmatpush1.msra.mxu0 0.0
    %616 = vmatprep.subr.mxu0 0.0
    %617 = vmatpush1.msra.mxu0 0.0
    %618 = vmatprep.subr.mxu0 0.0
    %619 = vmatpush1.msra.mxu0 0.0
    %620 = vmatprep.subr.mxu0 0.0
    %621 = vmatpush1.msra.mxu0 0.0
    %622 = vmatprep.subr.mxu0 0.0
    %623 = vmatpush1.msra.mxu0 0.0
    %624 = vmatprep.subr.mxu0 0.0
    %625 = vmatpush1.msra.mxu0 0.0
    %626 = vmatprep.subr.mxu0 0.0
    %627 = vmatpush1.msra.mxu0 0.0
    %628 = vmatprep.subr.mxu0 0.0
    %629 = vmatpush1.msra.mxu0 0.0
    %630 = vmatprep.subr.mxu0 0.0
    %631 = vmatpush1.msra.mxu0 0.0
    %632 = vmatprep.subr.mxu0 0.0
    %633 = vmatpush1.msra.mxu0 0.0
    %634 = vmatprep.subr.mxu0 0.0
    %635 = vmatpush1.msra.mxu0 0.0
    %636 = vmatprep.subr.mxu0 0.0
    %637 = vmatpush1.msra.mxu0 0.0
    %638 = vmatprep.subr.mxu0 0.0
    %639 = vmatpush1.msra.mxu0 0.0
    %640 = vmatprep.subr.mxu0 0.0
    %641 = vmatpush1.msra.mxu0 0.0
    %642 = vmatprep.subr.mxu0 0.0
    %643 = vmatpush1.msra.mxu0 0.0
    %644 = vmatprep.subr.mxu0 0.0
    %645 = vmatpush1.msra.mxu0 0.0
    %646 = vmatprep.subr.mxu0 0.0
    %647 = vmatpush1.msra.mxu0 0.0
    %648 = vmatprep.subr.mxu0 0.0
    %649 = vmatpush1.msra.mxu0 0.0
    %650 = vmatprep.mubr.f32.mxu0 0.0
    %651 = vmatmul.mubr.f32.gmra.mrb[0].mxu0 %v584
    %v652 = vpop.f32.mrb[0].mxu0
    %v653 = vadd.f32 0.0, %v652
    %v654 = vpop.f32.mrb[0].mxu0
    %655 = vdwg.mxu0
    %v657 = vrot.slane %v653, 2
    %v659 = vadd.f32 %v259, %v657
    %v660 = vmul.f32 %v659, %v276
    %v661 = vtanh.pop %v660
    %v662 = vmul.f32 %v661, %v276
    %v663 = vadd.f32 %v662, %v277
    %v665 = vrot.slane %v573, 6
    %v667 = vmul.f32 %v663, %v665
    %669 = vrot.lane.b32.xlu0 %v663, 64
    %v670 = vpop.permute.xlu0 %669
    %v672 = vmul.f32 %v663, %v670
    %674 = vrot.lane.b32.xlu0 %v672, 32
    %v675 = vpop.permute.xlu0 %674
    %v677 = vadd.f32 %v667, %v675
    %v678 = vtanh.pop %v677
    %680 = vrot.lane.b32.xlu0 %v678, 64
    %v681 = vpop.permute.xlu0 %680
    %v683 = vmul.f32 %v663, %v681
    %v685 = vrot.slane %v683, 6
    %686 = vrot.lane.b32.xlu0 %v685, 32
    %v687 = vpop.permute.xlu0 %686
    %v688 = vsel %vm185, %v687, 0
    %690 = vmatprep.subr.mxu0 0.0
    %691 = vmatpush1.msra.mxu0 %v267
    %692 = vmatprep.subr.mxu0 0.0
    %693 = vmatpush1.msra.mxu0 %v268
    %694 = vmatprep.subr.mxu0 0.0
    %695 = vmatpush1.msra.mxu0 %v269
    %696 = vmatprep.subr.mxu0 0.0
    %697 = vmatpush1.msra.mxu0 %v270
    %698 = vmatprep.subr.mxu0 0.0
    %699 = vmatpush1.msra.mxu0 0.0
    %700 = vmatprep.subr.mxu0 0.0
    %701 = vmatpush1.msra.mxu0 0.0
    %702 = vmatprep.subr.mxu0 0.0
    %703 = vmatpush1.msra.mxu0 0.0
    %704 = vmatprep.subr.mxu0 0.0
    %705 = vmatpush1.msra.mxu0 0.0
    %706 = vmatprep.subr.mxu0 0.0
    %707 = vmatpush1.msra.mxu0 0.0
    %708 = vmatprep.subr.mxu0 0.0
    %709 = vmatpush1.msra.mxu0 0.0
    %710 = vmatprep.subr.mxu0 0.0
    %711 = vmatpush1.msra.mxu0 0.0
    %712 = vmatprep.subr.mxu0 0.0
    %713 = vmatpush1.msra.mxu0 0.0
    %714 = vmatprep.subr.mxu0 0.0
    %715 = vmatpush1.msra.mxu0 0.0
    %716 = vmatprep.subr.mxu0 0.0
    %717 = vmatpush1.msra.mxu0 0.0
    %718 = vmatprep.subr.mxu0 0.0
    %719 = vmatpush1.msra.mxu0 0.0
    %720 = vmatprep.subr.mxu0 0.0
    %721 = vmatpush1.msra.mxu0 0.0
    %722 = vmatprep.subr.mxu0 0.0
    %723 = vmatpush1.msra.mxu0 0.0
    %724 = vmatprep.subr.mxu0 0.0
    %725 = vmatpush1.msra.mxu0 0.0
    %726 = vmatprep.subr.mxu0 0.0
    %727 = vmatpush1.msra.mxu0 0.0
    %728 = vmatprep.subr.mxu0 0.0
    %729 = vmatpush1.msra.mxu0 0.0
    %730 = vmatprep.subr.mxu0 0.0
    %731 = vmatpush1.msra.mxu0 0.0
    %732 = vmatprep.subr.mxu0 0.0
    %733 = vmatpush1.msra.mxu0 0.0
    %734 = vmatprep.subr.mxu0 0.0
    %735 = vmatpush1.msra.mxu0 0.0
    %736 = vmatprep.subr.mxu0 0.0
    %737 = vmatpush1.msra.mxu0 0.0
    %738 = vmatprep.subr.mxu0 0.0
    %739 = vmatpush1.msra.mxu0 0.0
    %740 = vmatprep.subr.mxu0 0.0
    %741 = vmatpush1.msra.mxu0 0.0
    %742 = vmatprep.subr.mxu0 0.0
    %743 = vmatpush1.msra.mxu0 0.0
    %744 = vmatprep.subr.mxu0 0.0
    %745 = vmatpush1.msra.mxu0 0.0
    %746 = vmatprep.subr.mxu0 0.0
    %747 = vmatpush1.msra.mxu0 0.0
    %748 = vmatprep.subr.mxu0 0.0
    %749 = vmatpush1.msra.mxu0 0.0
    %750 = vmatprep.subr.mxu0 0.0
    %751 = vmatpush1.msra.mxu0 0.0
    %752 = vmatprep.subr.mxu0 0.0
    %753 = vmatpush1.msra.mxu0 0.0
    %754 = vmatprep.mubr.f32.mxu0 0.0
    %755 = vmatmul.mubr.f32.gmra.mrb[0].mxu0 %v688
    %v756 = vpop.f32.mrb[0].mxu0
    %v757 = vadd.f32 0.0, %v756
    %v758 = vpop.f32.mrb[0].mxu0
    %759 = vdwg.mxu0
    %v760 = vadd.f32 %v264, %v757
    %v761 = vmul.f32 %v760, %v276
    %v762 = vtanh.pop %v761
    %v763 = vmul.f32 %v762, %v276
    %v764 = vadd.f32 %v763, %v277
    %v766 = vrot.slane %v677, 6
    %v768 = vmul.f32 %v764, %v766
    %770 = vrot.lane.b32.xlu0 %v764, 64
    %v771 = vpop.permute.xlu0 %770
    %v773 = vmul.f32 %v764, %v771
    %775 = vrot.lane.b32.xlu0 %v773, 32
    %v776 = vpop.permute.xlu0 %775
    %v778 = vadd.f32 %v768, %v776
    %v779 = vtanh.pop %v778
    %781 = vrot.lane.b32.xlu0 %v779, 64
    %v782 = vpop.permute.xlu0 %781
    %v784 = vmul.f32 %v764, %v782
    %786 = vrot.lane.b32.xlu0 %v784, 32
    %v787 = vpop.permute.xlu0 %786
    %v788 = vsel %vm185, %v787, 0
    %790 = vmatprep.subr.mxu0 0.0
    %791 = vmatpush1.msra.mxu0 %v267
    %792 = vmatprep.subr.mxu0 0.0
    %793 = vmatpush1.msra.mxu0 %v268
    %794 = vmatprep.subr.mxu0 0.0
    %795 = vmatpush1.msra.mxu0 %v269
    %796 = vmatprep.subr.mxu0 0.0
    %797 = vmatpush1.msra.mxu0 %v270
    %798 = vmatprep.subr.mxu0 0.0
    %799 = vmatpush1.msra.mxu0 0.0
    %800 = vmatprep.subr.mxu0 0.0
    %801 = vmatpush1.msra.mxu0 0.0
    %802 = vmatprep.subr.mxu0 0.0
    %803 = vmatpush1.msra.mxu0 0.0
    %804 = vmatprep.subr.mxu0 0.0
    %805 = vmatpush1.msra.mxu0 0.0
    %806 = vmatprep.subr.mxu0 0.0
    %807 = vmatpush1.msra.mxu0 0.0
    %808 = vmatprep.subr.mxu0 0.0
    %809 = vmatpush1.msra.mxu0 0.0
    %810 = vmatprep.subr.mxu0 0.0
    %811 = vmatpush1.msra.mxu0 0.0
    %812 = vmatprep.subr.mxu0 0.0
    %813 = vmatpush1.msra.mxu0 0.0
    %814 = vmatprep.subr.mxu0 0.0
    %815 = vmatpush1.msra.mxu0 0.0
    %816 = vmatprep.subr.mxu0 0.0
    %817 = vmatpush1.msra.mxu0 0.0
    %818 = vmatprep.subr.mxu0 0.0
    %819 = vmatpush1.msra.mxu0 0.0
    %820 = vmatprep.subr.mxu0 0.0
    %821 = vmatpush1.msra.mxu0 0.0
    %822 = vmatprep.subr.mxu0 0.0
    %823 = vmatpush1.msra.mxu0 0.0
    %824 = vmatprep.subr.mxu0 0.0
    %825 = vmatpush1.msra.mxu0 0.0
    %826 = vmatprep.subr.mxu0 0.0
    %827 = vmatpush1.msra.mxu0 0.0
    %828 = vmatprep.subr.mxu0 0.0
    %829 = vmatpush1.msra.mxu0 0.0
    %830 = vmatprep.subr.mxu0 0.0
    %831 = vmatpush1.msra.mxu0 0.0
    %832 = vmatprep.subr.mxu0 0.0
    %833 = vmatpush1.msra.mxu0 0.0
    %834 = vmatprep.subr.mxu0 0.0
    %835 = vmatpush1.msra.mxu0 0.0
    %836 = vmatprep.subr.mxu0 0.0
    %837 = vmatpush1.msra.mxu0 0.0
    %838 = vmatprep.subr.mxu0 0.0
    %839 = vmatpush1.msra.mxu0 0.0
    %840 = vmatprep.subr.mxu0 0.0
    %841 = vmatpush1.msra.mxu0 0.0
    %842 = vmatprep.subr.mxu0 0.0
    %843 = vmatpush1.msra.mxu0 0.0
    %844 = vmatprep.subr.mxu0 0.0
    %845 = vmatpush1.msra.mxu0 0.0
    %846 = vmatprep.subr.mxu0 0.0
    %847 = vmatpush1.msra.mxu0 0.0
    %848 = vmatprep.subr.mxu0 0.0
    %849 = vmatpush1.msra.mxu0 0.0
    %850 = vmatprep.subr.mxu0 0.0
    %851 = vmatpush1.msra.mxu0 0.0
    %852 = vmatprep.subr.mxu0 0.0
    %853 = vmatpush1.msra.mxu0 0.0
    %854 = vmatprep.mubr.f32.mxu0 0.0
    %855 = vmatmul.mubr.f32.gmra.mrb[0].mxu0 %v788
    %v856 = vpop.f32.mrb[0].mxu0
    %v857 = vadd.f32 0.0, %v856
    %v858 = vpop.f32.mrb[0].mxu0
    %859 = vdwg.mxu0
    %v861 = vrot.slane %v857, 6
    %v863 = vadd.f32 %v264, %v861
    %v864 = vmul.f32 %v863, %v276
    %v865 = vtanh.pop %v864
    %v866 = vmul.f32 %v865, %v276
    %v867 = vadd.f32 %v866, %v277
    %v869 = vrot.slane %v778, 6
    %v871 = vmul.f32 %v867, %v869
    %873 = vrot.lane.b32.xlu0 %v867, 64
    %v874 = vpop.permute.xlu0 %873
    %v876 = vmul.f32 %v867, %v874
    %878 = vrot.lane.b32.xlu0 %v876, 32
    %v879 = vpop.permute.xlu0 %878
    %v881 = vadd.f32 %v871, %v879
    %v882 = vtanh.pop %v881
    %884 = vrot.lane.b32.xlu0 %v882, 64
    %v885 = vpop.permute.xlu0 %884
    %v887 = vmul.f32 %v867, %v885
    %v889 = vrot.slane %v887, 2
    %890 = vrot.lane.b32.xlu0 %v889, 32
    %v891 = vpop.permute.xlu0 %890
    %v892 = vsel %vm185, %v891, 0
    %894 = vmatprep.subr.mxu0 0.0
    %895 = vmatpush1.msra.mxu0 %v267
    %896 = vmatprep.subr.mxu0 0.0
    %897 = vmatpush1.msra.mxu0 %v268
    %898 = vmatprep.subr.mxu0 0.0
    %899 = vmatpush1.msra.mxu0 %v269
    %900 = vmatprep.subr.mxu0 0.0
    %901 = vmatpush1.msra.mxu0 %v270
    %902 = vmatprep.subr.mxu0 0.0
    %903 = vmatpush1.msra.mxu0 0.0
    %904 = vmatprep.subr.mxu0 0.0
    %905 = vmatpush1.msra.mxu0 0.0
    %906 = vmatprep.subr.mxu0 0.0
    %907 = vmatpush1.msra.mxu0 0.0
    %908 = vmatprep.subr.mxu0 0.0
    %909 = vmatpush1.msra.mxu0 0.0
    %910 = vmatprep.subr.mxu0 0.0
    %911 = vmatpush1.msra.mxu0 0.0
    %912 = vmatprep.subr.mxu0 0.0
    %913 = vmatpush1.msra.mxu0 0.0
    %914 = vmatprep.subr.mxu0 0.0
    %915 = vmatpush1.msra.mxu0 0.0
    %916 = vmatprep.subr.mxu0 0.0
    %917 = vmatpush1.msra.mxu0 0.0
    %918 = vmatprep.subr.mxu0 0.0
    %919 = vmatpush1.msra.mxu0 0.0
    %920 = vmatprep.subr.mxu0 0.0
    %921 = vmatpush1.msra.mxu0 0.0
    %922 = vmatprep.subr.mxu0 0.0
    %923 = vmatpush1.msra.mxu0 0.0
    %924 = vmatprep.subr.mxu0 0.0
    %925 = vmatpush1.msra.mxu0 0.0
    %926 = vmatprep.subr.mxu0 0.0
    %927 = vmatpush1.msra.mxu0 0.0
    %928 = vmatprep.subr.mxu0 0.0
    %929 = vmatpush1.msra.mxu0 0.0
    %930 = vmatprep.subr.mxu0 0.0
    %931 = vmatpush1.msra.mxu0 0.0
    %932 = vmatprep.subr.mxu0 0.0
    %933 = vmatpush1.msra.mxu0 0.0
    %934 = vmatprep.subr.mxu0 0.0
    %935 = vmatpush1.msra.mxu0 0.0
    %936 = vmatprep.subr.mxu0 0.0
    %937 = vmatpush1.msra.mxu0 0.0
    %938 = vmatprep.subr.mxu0 0.0
    %939 = vmatpush1.msra.mxu0 0.0
    %940 = vmatprep.subr.mxu0 0.0
    %941 = vmatpush1.msra.mxu0 0.0
    %942 = vmatprep.subr.mxu0 0.0
    %943 = vmatpush1.msra.mxu0 0.0
    %944 = vmatprep.subr.mxu0 0.0
    %945 = vmatpush1.msra.mxu0 0.0
    %946 = vmatprep.subr.mxu0 0.0
    %947 = vmatpush1.msra.mxu0 0.0
    %948 = vmatprep.subr.mxu0 0.0
    %949 = vmatpush1.msra.mxu0 0.0
    %950 = vmatprep.subr.mxu0 0.0
    %951 = vmatpush1.msra.mxu0 0.0
    %952 = vmatprep.subr.mxu0 0.0
    %953 = vmatpush1.msra.mxu0 0.0
    %954 = vmatprep.subr.mxu0 0.0
    %955 = vmatpush1.msra.mxu0 0.0
    %956 = vmatprep.subr.mxu0 0.0
    %957 = vmatpush1.msra.mxu0 0.0
    %958 = vmatprep.mubr.f32.mxu0 0.0
    %959 = vmatmul.mubr.f32.gmra.mrb[0].mxu0 %v892
    %v960 = vpop.f32.mrb[0].mxu0
    %v961 = vadd.f32 0.0, %v960
    %v962 = vpop.f32.mrb[0].mxu0
    %963 = vdwg.mxu0
    %v965 = vrot.slane %v961, 4
    %v967 = vadd.f32 %v264, %v965
    %v968 = vmul.f32 %v967, %v276
    %v969 = vtanh.pop %v968
    %v970 = vmul.f32 %v969, %v276
    %v971 = vadd.f32 %v970, %v277
    %v973 = vrot.slane %v881, 6
    %v975 = vmul.f32 %v971, %v973
    %977 = vrot.lane.b32.xlu0 %v971, 64
    %v978 = vpop.permute.xlu0 %977
    %v980 = vmul.f32 %v971, %v978
    %982 = vrot.lane.b32.xlu0 %v980, 32
    %v983 = vpop.permute.xlu0 %982
    %v985 = vadd.f32 %v975, %v983
    %v986 = vtanh.pop %v985
    %988 = vrot.lane.b32.xlu0 %v986, 64
    %v989 = vpop.permute.xlu0 %988
    %v991 = vmul.f32 %v971, %v989
    %v993 = vrot.slane %v991, 4
    %994 = vrot.lane.b32.xlu0 %v993, 32
    %v995 = vpop.permute.xlu0 %994
    %v996 = vsel %vm185, %v995, 0
    %998 = vmatprep.subr.mxu0 0.0
    %999 = vmatpush1.msra.mxu0 %v267
    %1000 = vmatprep.subr.mxu0 0.0
    %1001 = vmatpush1.msra.mxu0 %v268
    %1002 = vmatprep.subr.mxu0 0.0
    %1003 = vmatpush1.msra.mxu0 %v269
    %1004 = vmatprep.subr.mxu0 0.0
    %1005 = vmatpush1.msra.mxu0 %v270
    %1006 = vmatprep.subr.mxu0 0.0
    %1007 = vmatpush1.msra.mxu0 0.0
    %1008 = vmatprep.subr.mxu0 0.0
    %1009 = vmatpush1.msra.mxu0 0.0
    %1010 = vmatprep.subr.mxu0 0.0
    %1011 = vmatpush1.msra.mxu0 0.0
    %1012 = vmatprep.subr.mxu0 0.0
    %1013 = vmatpush1.msra.mxu0 0.0
    %1014 = vmatprep.subr.mxu0 0.0
    %1015 = vmatpush1.msra.mxu0 0.0
    %1016 = vmatprep.subr.mxu0 0.0
    %1017 = vmatpush1.msra.mxu0 0.0
    %1018 = vmatprep.subr.mxu0 0.0
    %1019 = vmatpush1.msra.mxu0 0.0
    %1020 = vmatprep.subr.mxu0 0.0
    %1021 = vmatpush1.msra.mxu0 0.0
    %1022 = vmatprep.subr.mxu0 0.0
    %1023 = vmatpush1.msra.mxu0 0.0
    %1024 = vmatprep.subr.mxu0 0.0
    %1025 = vmatpush1.msra.mxu0 0.0
    %1026 = vmatprep.subr.mxu0 0.0
    %1027 = vmatpush1.msra.mxu0 0.0
    %1028 = vmatprep.subr.mxu0 0.0
    %1029 = vmatpush1.msra.mxu0 0.0
    %1030 = vmatprep.subr.mxu0 0.0
    %1031 = vmatpush1.msra.mxu0 0.0
    %1032 = vmatprep.subr.mxu0 0.0
    %1033 = vmatpush1.msra.mxu0 0.0
    %1034 = vmatprep.subr.mxu0 0.0
    %1035 = vmatpush1.msra.mxu0 0.0
    %1036 = vmatprep.subr.mxu0 0.0
    %1037 = vmatpush1.msra.mxu0 0.0
    %1038 = vmatprep.subr.mxu0 0.0
    %1039 = vmatpush1.msra.mxu0 0.0
    %1040 = vmatprep.subr.mxu0 0.0
    %1041 = vmatpush1.msra.mxu0 0.0
    %1042 = vmatprep.subr.mxu0 0.0
    %1043 = vmatpush1.msra.mxu0 0.0
    %1044 = vmatprep.subr.mxu0 0.0
    %1045 = vmatpush1.msra.mxu0 0.0
    %1046 = vmatprep.subr.mxu0 0.0
    %1047 = vmatpush1.msra.mxu0 0.0
    %1048 = vmatprep.subr.mxu0 0.0
    %1049 = vmatpush1.msra.mxu0 0.0
    %1050 = vmatprep.subr.mxu0 0.0
    %1051 = vmatpush1.msra.mxu0 0.0
    %1052 = vmatprep.subr.mxu0 0.0
    %1053 = vmatpush1.msra.mxu0 0.0
    %1054 = vmatprep.subr.mxu0 0.0
    %1055 = vmatpush1.msra.mxu0 0.0
    %1056 = vmatprep.subr.mxu0 0.0
    %1057 = vmatpush1.msra.mxu0 0.0
    %1058 = vmatprep.subr.mxu0 0.0
    %1059 = vmatpush1.msra.mxu0 0.0
    %1060 = vmatprep.subr.mxu0 0.0
    %1061 = vmatpush1.msra.mxu0 0.0
    %1062 = vmatprep.mubr.f32.mxu0 0.0
    %1063 = vmatmul.mubr.f32.gmra.mrb[0].mxu0 %v996
    %v1064 = vpop.f32.mrb[0].mxu0
    %v1065 = vadd.f32 0.0, %v1064
    %v1066 = vpop.f32.mrb[0].mxu0
    %1067 = vdwg.mxu0
    %v1069 = vrot.slane %v1065, 2
    %v1071 = vadd.f32 %v264, %v1069
    %v1072 = vmul.f32 %v1071, %v276
    %v1073 = vtanh.pop %v1072
    %v1074 = vmul.f32 %v1073, %v276
    %v1075 = vadd.f32 %v1074, %v277
    %v1077 = vrot.slane %v985, 6
    %v1079 = vmul.f32 %v1075, %v1077
    %1081 = vrot.lane.b32.xlu0 %v1075, 64
    %v1082 = vpop.permute.xlu0 %1081
    %v1084 = vmul.f32 %v1075, %v1082
    %1086 = vrot.lane.b32.xlu0 %v1084, 32
    %v1087 = vpop.permute.xlu0 %1086
    %v1089 = vadd.f32 %v1079, %v1087
    %v1090 = vtanh.pop %v1089
    %1092 = vrot.lane.b32.xlu0 %v1090, 64
    %v1093 = vpop.permute.xlu0 %1092
    %v1095 = vmul.f32 %v1075, %v1093
    %1097 = vrot.lane.b32.xlu0 %v1095, 32
    %v1098 = vpop.permute.xlu0 %1097
    %v1100 = vsel %vm185, %v1098, %v1089
    %vm1101 = vcmask 523270
    %1102 = vst.msk [vmem:[#allocation10 - $0x6] sm:$0xc0] %vm1101, %v1100
    // Predicated region
    $region42: #{tpu_custom_call.1} parent=1 // pred_check
      _
    $region43: #{tpu_custom_call.1} parent=1 // pred_check_branch
      %1104 = sbr.rel (0) target = $region45
    $region44: #{tpu_custom_call.1} parent=1 // pred_region
      %s1106 = ssub.s32 32, 32
      %1107 = vsyncadd [#allocation4], %s1106
      %s1109 = sshll.u32 [#allocation10], 4
      %s1110 = int_to_ptr.vmem [resolvable:$true] %s1109
      %1112 = dma.vmem_to_hbm [thread:$0]  %s1110, 32, %s6, [#allocation4]
    $region45: #{tpu_custom_call.1} parent=1 // pred_fallthru
      _
    // Predicated region
    $region46: #{tpu_custom_call.1} parent=1 // pred_check
      _
    $region47: #{tpu_custom_call.1} parent=1 // pred_check_branch
      %1114 = sbr.rel (0) target = $region49
    $region48: #{tpu_custom_call.1} parent=1 // pred_region
      %1115 = dma.done [#allocation4], 32
    $region49: #{tpu_custom_call.1} parent=1 // pred_fallthru
      _
    %1116 = vsyncpa [#allocation3], 1
    %1117 = vsyncpa [#allocation6], 1
    %1118 = vsyncpa [#allocation9], 1
    %1119 = vsyncpa [#allocation4], 1

</llo_original>
